<compile_context>
chip_gen: v5e
topology: v5e:2x2
jax: 0.10.0
libtpu: 0.0.40
codegen_flags: <defaults>
</compile_context>

<pallas_src>
import jax
import jax.numpy as jnp
from jax.experimental import pallas as pl
from jax.experimental.pallas import tpu as pltpu

IN_FEATURES = 12 * 12 * 5     # 720 (matches nn.Flatten of (5, 12, 12))
HIDDEN = 128
OUT_FEATURES = 6              # len(ACTIONS)
OUT_PAD = 128                 # lane-dense output block (dead cols sliced off)
MAX_TILE = 1024               # batch-tile cap (VMEM-safe on v5e/v6e/v7x)


def dqn_kernel(x_ref, w1_ref, b1_ref, w2_ref, b2_ref, o_ref):
    # Layer 1: Linear(720 -> 128) + bias + ReLU.
    # x arrives as f32 straight from HBM; cast to bf16 on the VPU and run the
    # MXU matmul with f32 accumulation.
    x = x_ref[...].astype(jnp.bfloat16)
    h = jnp.dot(x, w1_ref[...], preferred_element_type=jnp.float32)
    h = jnp.maximum(h + b1_ref[...], 0.0)
    # Layer 2: Linear(128 -> 6), padded to 128 output lanes (zero weights/bias
    # in the pad region; wrapper slices them off).  Store bf16 to halve the
    # output writeback on a memory-bound kernel.
    out = jnp.dot(h.astype(jnp.bfloat16), w2_ref[...],
                  preferred_element_type=jnp.float32)
    o_ref[...] = (out + b2_ref[...]).astype(jnp.bfloat16)


def _round_up(n, m):
    return ((n + m - 1) // m) * m


def _choose_tile(batch):
    """Batch tile: multiple of 16 (bf16 sublane pack), capped at MAX_TILE, and
    split into >=2 tiles whenever batch > 16 so the 'parallel' axis spans both
    v7x TensorCores."""
    if batch <= 16:
        return 16
    half = (batch + 1) // 2
    return min(MAX_TILE, _round_up(half, 16))


def prepare_params(w1, b1, w2, b2):
    """One-time layout prep (call when params are created/updated, NOT per
    forward): pad N 6 -> 128, cast weights to bf16.
    Note: PyTorch nn.Linear stores weight as (out, in); these are (in, out),
    so checkpointed PyTorch weights must be transposed before this call."""
    w1p = w1.astype(jnp.bfloat16)                                   # (720, 128)
    b1p = b1.reshape(1, HIDDEN).astype(jnp.float32)                 # (1, 128)
    w2p = jnp.zeros((HIDDEN, OUT_PAD), jnp.bfloat16)
    w2p = w2p.at[:, :OUT_FEATURES].set(w2.astype(jnp.bfloat16))     # (128, 128)
    b2p = jnp.zeros((1, OUT_PAD), jnp.float32)
    b2p = b2p.at[:, :OUT_FEATURES].set(
        b2.reshape(1, OUT_FEATURES).astype(jnp.float32))            # (1, 128)
    return w1p, b1p, w2p, b2p


@jax.jit
def dqn_forward(x_nchw, w1p, b1p, w2p, b2p):
    """x_nchw: (B, 5, 12, 12) float32 -> (B, 6) float32 Q-values.
    Params must already be laid out by prepare_params()."""
    B = x_nchw.shape[0]
    x2d = x_nchw.reshape(B, IN_FEATURES)        # nn.Flatten order; no copy/cast

    TB = _choose_tile(B)
    grid = (pl.cdiv(B, TB),)                    # ragged last block is masked

    cost = pl.CostEstimate(
        flops=2 * B * (IN_FEATURES * HIDDEN + HIDDEN * OUT_PAD),
        transcendentals=0,
        bytes_accessed=(x2d.size * 4 + w1p.size * 2 + b1p.size * 4
                        + w2p.size * 2 + b2p.size * 4 + B * OUT_PAD * 2),
    )

    out = pl.pallas_call(
        dqn_kernel,
        out_shape=jax.ShapeDtypeStruct((B, OUT_PAD), jnp.bfloat16),
        grid=grid,
        in_specs=[
            pl.BlockSpec((TB, IN_FEATURES), lambda i: (i, 0)),      # x: batch-tiled, full-K
            pl.BlockSpec((IN_FEATURES, HIDDEN), lambda i: (0, 0)),  # w1: VMEM-resident
            pl.BlockSpec((1, HIDDEN), lambda i: (0, 0)),            # b1: VMEM-resident
            pl.BlockSpec((HIDDEN, OUT_PAD), lambda i: (0, 0)),      # w2: VMEM-resident
            pl.BlockSpec((1, OUT_PAD), lambda i: (0, 0)),           # b2: VMEM-resident
        ],
        out_specs=pl.BlockSpec((TB, OUT_PAD), lambda i: (i, 0)),
        compiler_params=pltpu.CompilerParams(
            dimension_semantics=("parallel",),  # shard batch tiles across TCs
        ),
        cost_estimate=cost,
    )(x2d, w1p, b1p, w2p, b2p)

    # Only the first 6 columns are real Q-values; never reduce over the padded
    # columns before this slice.
    return out[:, :OUT_FEATURES].astype(jnp.float32)


def init_params(key):
    """Deterministic init matching PyTorch nn.Linear shapes (stored (in, out))."""
    k1, k2, k3, k4 = jax.random.split(key, 4)
    bound1 = 1.0 / jnp.sqrt(IN_FEATURES)
    bound2 = 1.0 / jnp.sqrt(HIDDEN)
    w1 = jax.random.uniform(k1, (IN_FEATURES, HIDDEN), jnp.float32, -bound1, bound1)
    b1 = jax.random.uniform(k2, (HIDDEN,), jnp.float32, -bound1, bound1)
    w2 = jax.random.uniform(k3, (HIDDEN, OUT_FEATURES), jnp.float32, -bound2, bound2)
    b2 = jax.random.uniform(k4, (OUT_FEATURES,), jnp.float32, -bound2, bound2)
    return w1, b1, w2, b2


if __name__ == "__main__":
    key = jax.random.PRNGKey(0)
    k_x, k_p = jax.random.split(key)

    # TODO(synk): state_to_features / act_rule / train_step (CrossEntropyLoss +
    # Adam + file logging) are environment/training glue with no tensor
    # semantics; the kernel implements the nn.Sequential forward on
    # already-featurized (B, 5, 12, 12) input.
    B = 2
    x = jax.random.normal(k_x, (B, 5, 12, 12), dtype=jnp.float32)
    w1, b1, w2, b2 = init_params(k_p)
    w1p, b1p, w2p, b2p = prepare_params(w1, b1, w2, b2)   # one-time layout prep

    out = jax.block_until_ready(dqn_forward(x, w1p, b1p, w2p, b2p))

    # Reference in plain JAX (f32). Kernel uses bf16 weights/activations/output
    # with f32 accumulation, so compare with bf16-sized tolerance.
    ref = jnp.maximum(x.reshape(B, -1) @ w1 + b1, 0.0) @ w2 + b2
    assert out.shape == (B, OUT_FEATURES)
    assert jnp.allclose(out, ref, atol=2e-2, rtol=2e-2), float(jnp.max(jnp.abs(out - ref)))

    print("KERNEL_OK")
</pallas_src>

<mosaic_0001>
module attributes {stable_mosaic.version = 11 : i64} {
  func.func @dqn_kernel(%arg0: i32, %arg1: memref<16x720xf32, #tpu.memory_space<vmem>>, %arg2: memref<720x128xbf16, #tpu.memory_space<vmem>>, %arg3: memref<1x128xf32, #tpu.memory_space<vmem>>, %arg4: memref<128x128xbf16, #tpu.memory_space<vmem>>, %arg5: memref<1x128xf32, #tpu.memory_space<vmem>>, %arg6: memref<16x128xbf16, #tpu.memory_space<vmem>>) attributes {dimension_semantics = [#tpu.dimension_semantics<parallel>], iteration_bounds = array<i64: 1>, scalar_prefetch = 0 : i64, scratch_operands = 0 : i64, tpu.core_type = #tpu.core_type<tc>, window_params = [{transform_indices = @transform_0, window_bounds = array<i64: 16, 720>}, {pipeline_mode = #tpu.pipeline_mode<synchronous>, transform_indices = @transform_1, window_bounds = array<i64: 720, 128>}, {pipeline_mode = #tpu.pipeline_mode<synchronous>, transform_indices = @transform_2, window_bounds = array<i64: 1, 128>}, {pipeline_mode = #tpu.pipeline_mode<synchronous>, transform_indices = @transform_3, window_bounds = array<i64: 128, 128>}, {pipeline_mode = #tpu.pipeline_mode<synchronous>, transform_indices = @transform_4, window_bounds = array<i64: 1, 128>}, {transform_indices = @transform_5, window_bounds = array<i64: 16, 128>}]} {
    %c0 = arith.constant 0 : index
    %c0_0 = arith.constant 0 : index
    %0 = vector.load %arg1[%c0, %c0_0] : memref<16x720xf32, #tpu.memory_space<vmem>>, vector<16x720xf32>
    %1 = arith.truncf %0 : vector<16x720xf32> to vector<16x720xbf16>
    %c0_1 = arith.constant 0 : index
    %c0_2 = arith.constant 0 : index
    %2 = vector.load %arg2[%c0_1, %c0_2] : memref<720x128xbf16, #tpu.memory_space<vmem>>, vector<720x128xbf16>
    %cst = arith.constant dense<0.000000e+00> : vector<16x128xf32>
    %3 = tpu.matmul %1, %2, %cst {dimension_numbers = #tpu.dot_dimension_numbers<[1], [0], [0], [1], [0, 0, 1, 1], [], []>} : vector<16x720xbf16>, vector<720x128xbf16>, vector<16x128xf32> -> vector<16x128xf32>
    %c0_3 = arith.constant 0 : index
    %c0_4 = arith.constant 0 : index
    %4 = vector.load %arg3[%c0_3, %c0_4] : memref<1x128xf32, #tpu.memory_space<vmem>>, vector<1x128xf32>
    %5 = vector.broadcast %4 : vector<1x128xf32> to vector<16x128xf32>
    %6 = arith.addf %3, %5 : vector<16x128xf32>
    %cst_5 = arith.constant 0.000000e+00 : f32
    %7 = vector.broadcast %cst_5 : f32 to vector<16x128xf32>
    %8 = arith.maximumf %6, %7 : vector<16x128xf32>
    %9 = arith.truncf %8 : vector<16x128xf32> to vector<16x128xbf16>
    %c0_6 = arith.constant 0 : index
    %c0_7 = arith.constant 0 : index
    %10 = vector.load %arg4[%c0_6, %c0_7] : memref<128x128xbf16, #tpu.memory_space<vmem>>, vector<128x128xbf16>
    %cst_8 = arith.constant dense<0.000000e+00> : vector<16x128xf32>
    %11 = tpu.matmul %9, %10, %cst_8 {dimension_numbers = #tpu.dot_dimension_numbers<[1], [0], [0], [1], [0, 0, 1, 1], [], []>} : vector<16x128xbf16>, vector<128x128xbf16>, vector<16x128xf32> -> vector<16x128xf32>
    %c0_9 = arith.constant 0 : index
    %c0_10 = arith.constant 0 : index
    %12 = vector.load %arg5[%c0_9, %c0_10] : memref<1x128xf32, #tpu.memory_space<vmem>>, vector<1x128xf32>
    %13 = vector.broadcast %12 : vector<1x128xf32> to vector<16x128xf32>
    %14 = arith.addf %11, %13 : vector<16x128xf32>
    %15 = arith.truncf %14 : vector<16x128xf32> to vector<16x128xbf16>
    %c0_11 = arith.constant 0 : index
    %c0_12 = arith.constant 0 : index
    %16 = vector.load %arg6[%c0_11, %c0_12] : memref<16x128xbf16, #tpu.memory_space<vmem>>, vector<16x128xbf16>
    tpu.vector_store %arg6[%c0_11, %c0_12], %15 {strides = array<i32>} : memref<16x128xbf16, #tpu.memory_space<vmem>>, vector<16x128xbf16>,
    return
  }
  func.func @transform_0(%arg0: i32) -> (i32, i32) {
    %c0_i32 = arith.constant 0 : i32
    %c0_i32_0 = arith.constant 0 : i32
    return %arg0, %c0_i32 : i32, i32
  }
  func.func @transform_1(%arg0: i32) -> (i32, i32) {
    %c0_i32 = arith.constant 0 : i32
    %c0_i32_0 = arith.constant 0 : i32
    %c0_i32_1 = arith.constant 0 : i32
    return %c0_i32, %c0_i32_0 : i32, i32
  }
  func.func @transform_2(%arg0: i32) -> (i32, i32) {
    %c0_i32 = arith.constant 0 : i32
    %c0_i32_0 = arith.constant 0 : i32
    %c0_i32_1 = arith.constant 0 : i32
    return %c0_i32, %c0_i32_0 : i32, i32
  }
  func.func @transform_3(%arg0: i32) -> (i32, i32) {
    %c0_i32 = arith.constant 0 : i32
    %c0_i32_0 = arith.constant 0 : i32
    %c0_i32_1 = arith.constant 0 : i32
    return %c0_i32, %c0_i32_0 : i32, i32
  }
  func.func @transform_4(%arg0: i32) -> (i32, i32) {
    %c0_i32 = arith.constant 0 : i32
    %c0_i32_0 = arith.constant 0 : i32
    %c0_i32_1 = arith.constant 0 : i32
    return %c0_i32, %c0_i32_0 : i32, i32
  }
  func.func @transform_5(%arg0: i32) -> (i32, i32) {
    %c0_i32 = arith.constant 0 : i32
    %c0_i32_0 = arith.constant 0 : i32
    return %arg0, %c0_i32 : i32, i32
  }
}

</mosaic_0001>

<llo_original>
// kernel: dqn_forward.1
$region0: #{dqn_forward.1}
  #allocation0 [shape = 'u32[]', space=smem, size = 0x4, offset = 0x4, fixed_abs, tag = 'smem constant byte address 0x4 - core index']
  #allocation1 [shape = 'u32[72,128]{1,0:T(1,128)}', space=vmem, size = 0x9000, scoped, tag = 'internal scratch']
  %s0 = inlined_call_operand.vmem [shape: f32[2,720], index: 0, kind: input, shape index: {}]
  %s1 = inlined_call_operand.vmem [shape: bf16[720,128], index: 1, kind: input, shape index: {}]
  %s2 = inlined_call_operand.vmem [shape: f32[1,128], index: 2, kind: input, shape index: {}]
  %s3 = inlined_call_operand.vmem [shape: bf16[128,128], index: 3, kind: input, shape index: {}]
  %s4 = inlined_call_operand.vmem [shape: f32[1,128], index: 4, kind: input, shape index: {}]
  %s5 = inlined_call_operand.vmem [shape: bf16[2,128], index: 5, kind: output, shape index: {}]
  %s6 = sld [smem:[#allocation0]]
  $region60: #{dqn_forward.1} parent=0
    _
  %s8 = ssub.s32 1, %s6
  %s9 = scalar_select 0, %s8, %s6
  $region1: #{dqn_forward.1} parent=0
    #allocation2 [shape = 'u8[4096]{0}', space=vmem, size = 0x1000, scoped, tag = 'output window, operand 0, single buffered']
    // Predicated region
    $region2: #{dqn_forward.1} parent=1 // pred_check
      _
    $region3: #{dqn_forward.1} parent=1 // pred_check_branch
      %11 = sbr.rel (0) target = $region5
    $region4: #{dqn_forward.1} parent=1 // pred_region
      _
    $region5: #{dqn_forward.1} parent=1 // pred_fallthru
      _
    // Predicated region
    $region6: #{dqn_forward.1} parent=1 // pred_check
      _
    $region7: #{dqn_forward.1} parent=1 // pred_check_branch
      %13 = sbr.rel (0) target = $region9
    $region8: #{dqn_forward.1} parent=1 // pred_region
      _
    $region9: #{dqn_forward.1} parent=1 // pred_fallthru
      _
    // Predicated region
    $region10: #{dqn_forward.1} parent=1 // pred_check
      _
    $region11: #{dqn_forward.1} parent=1 // pred_check_branch
      %15 = sbr.rel (0) target = $region13
    $region12: #{dqn_forward.1} parent=1 // pred_region
      _
    $region13: #{dqn_forward.1} parent=1 // pred_fallthru
      _
    // Predicated region
    $region14: #{dqn_forward.1} parent=1 // pred_check
      _
    $region15: #{dqn_forward.1} parent=1 // pred_check_branch
      %17 = sbr.rel (0) target = $region17
    $region16: #{dqn_forward.1} parent=1 // pred_region
      _
    $region17: #{dqn_forward.1} parent=1 // pred_fallthru
      _
    // Predicated region
    $region18: #{dqn_forward.1} parent=1 // pred_check
      _
    $region19: #{dqn_forward.1} parent=1 // pred_check_branch
      %19 = sbr.rel (0) target = $region21
    $region20: #{dqn_forward.1} parent=1 // pred_region
      _
    $region21: #{dqn_forward.1} parent=1 // pred_fallthru
      _
    %v21 = vld [vmem:[%s0] sm:$0xff]
    %v22 = vld [vmem:[%s0 + $0x8] sm:$0xf]
    %v23 = vld [vmem:[%s0 + $0xc] sm:$0xff]
    %v24 = vld [vmem:[%s0 + $0x14] sm:$0xf]
    %v25 = vld [vmem:[%s0 + $0x18] sm:$0xff]
    %v26 = vld [vmem:[%s0 + $0x20] sm:$0xf]
    %v27 = vld [vmem:[%s0 + $0x24] sm:$0xff]
    %v28 = vld [vmem:[%s0 + $0x2c] sm:$0xf]
    %v29 = vld [vmem:[%s0 + $0x30] sm:$0xff]
    %v30 = vld [vmem:[%s0 + $0x38] sm:$0xf]
    %v31 = vld [vmem:[%s0 + $0x3c] sm:$0xff]
    %v32 = vld [vmem:[%s0 + $0x44] sm:$0xf]
    %v33 = vld [vmem:[%s0 + $0x48] sm:$0xff]
    %v34 = vld [vmem:[%s0 + $0x50] sm:$0xf]
    %v35 = vld [vmem:[%s0 + $0x54] sm:$0xff]
    %v36 = vld [vmem:[%s0 + $0x5c] sm:$0xf]
    %53 = vst [vmem:[#allocation1] ss:$4 sm:$0xff] %v21
    %s54 = scalar_lea.vmem [#allocation1], 1
    %55 = vst [vmem:[%s54] ss:$4 sm:$0xff] %v23
    %s56 = scalar_lea.vmem [#allocation1], 2
    %57 = vst [vmem:[%s56] ss:$4 sm:$0xff] %v25
    %s58 = scalar_lea.vmem [#allocation1], 3
    %59 = vst [vmem:[%s58] ss:$4 sm:$0xff] %v27
    %s60 = scalar_lea.vmem [#allocation1], 32
    %61 = vst [vmem:[%s60] ss:$4 sm:$0xff] %v22
    %s62 = scalar_lea.vmem [#allocation1], 33
    %63 = vst [vmem:[%s62] ss:$4 sm:$0xff] %v24
    %s64 = scalar_lea.vmem [#allocation1], 34
    %65 = vst [vmem:[%s64] ss:$4 sm:$0xff] %v26
    %s66 = scalar_lea.vmem [#allocation1], 35
    %67 = vst [vmem:[%s66] ss:$4 sm:$0xff] %v28
    %v68 = vld.sshfl [vmem:[#allocation1] sm:$0xff pattern:$0x73625140]
    %v69 = vld.sshfl [vmem:[#allocation1 + $0x8] sm:$0xff pattern:$0x73625140]
    %v70 = vld.sshfl [vmem:[#allocation1 + $0x10] sm:$0xff pattern:$0x73625140]
    %v71 = vld.sshfl [vmem:[#allocation1 + $0x18] sm:$0xff pattern:$0x73625140]
    %v72 = vld.sshfl [vmem:[#allocation1 + $0x20] sm:$0xff pattern:$0x73625140]
    %v73 = vld.sshfl [vmem:[#allocation1 + $0x28] sm:$0xff pattern:$0x73625140]
    %74 = vst [vmem:[#allocation1] ss:$4 sm:$0xff] %v29
    %75 = vst [vmem:[%s54] ss:$4 sm:$0xff] %v31
    %76 = vst [vmem:[%s56] ss:$4 sm:$0xff] %v33
    %77 = vst [vmem:[%s58] ss:$4 sm:$0xff] %v35
    %78 = vst [vmem:[%s60] ss:$4 sm:$0xff] %v30
    %79 = vst [vmem:[%s62] ss:$4 sm:$0xff] %v32
    %80 = vst [vmem:[%s64] ss:$4 sm:$0xff] %v34
    %81 = vst [vmem:[%s66] ss:$4 sm:$0xff] %v36
    %v82 = vld.sshfl [vmem:[#allocation1] sm:$0xff pattern:$0x73625140]
    %v83 = vld.sshfl [vmem:[#allocation1 + $0x8] sm:$0xff pattern:$0x73625140]
    %v84 = vld.sshfl [vmem:[#allocation1 + $0x10] sm:$0xff pattern:$0x73625140]
    %v85 = vld.sshfl [vmem:[#allocation1 + $0x18] sm:$0xff pattern:$0x73625140]
    %v86 = vld.sshfl [vmem:[#allocation1 + $0x20] sm:$0xff pattern:$0x73625140]
    %v87 = vld.sshfl [vmem:[#allocation1 + $0x28] sm:$0xff pattern:$0x73625140]
    %v100 = vpack.c.bf16 %v82, %v68
    %v101 = vpack.c.bf16 %v83, %v69
    %v102 = vpack.c.bf16 %v84, %v70
    %v103 = vpack.c.bf16 %v85, %v71
    %v104 = vpack.c.bf16 %v86, %v72
    %v105 = vpack.c.bf16 %v87, %v73
    %v106 = vld [vmem:[%s1] sm:$0xf]
    %v107 = vld [vmem:[%s1 + $0x4] sm:$0xf]
    %v108 = vld [vmem:[%s1 + $0x8] sm:$0xf]
    %v109 = vld [vmem:[%s1 + $0xc] sm:$0xf]
    %v110 = vld [vmem:[%s1 + $0x10] sm:$0xf]
    %v111 = vld [vmem:[%s1 + $0x14] sm:$0xf]
    %v112 = vld [vmem:[%s1 + $0x18] sm:$0xf]
    %v113 = vld [vmem:[%s1 + $0x1c] sm:$0xf]
    %v114 = vld [vmem:[%s1 + $0x20] sm:$0xf]
    %v115 = vld [vmem:[%s1 + $0x24] sm:$0xf]
    %v116 = vld [vmem:[%s1 + $0x28] sm:$0xf]
    %v117 = vld [vmem:[%s1 + $0x2c] sm:$0xf]
    %v118 = vld [vmem:[%s1 + $0x30] sm:$0xf]
    %v119 = vld [vmem:[%s1 + $0x34] sm:$0xf]
    %v120 = vld [vmem:[%s1 + $0x38] sm:$0xf]
    %v121 = vld [vmem:[%s1 + $0x3c] sm:$0xf]
    %v122 = vld [vmem:[%s1 + $0x40] sm:$0xf]
    %v123 = vld [vmem:[%s1 + $0x44] sm:$0xf]
    %v124 = vld [vmem:[%s1 + $0x48] sm:$0xf]
    %v125 = vld [vmem:[%s1 + $0x4c] sm:$0xf]
    %v126 = vld [vmem:[%s1 + $0x50] sm:$0xf]
    %v127 = vld [vmem:[%s1 + $0x54] sm:$0xf]
    %v128 = vld [vmem:[%s1 + $0x58] sm:$0xf]
    %v129 = vld [vmem:[%s1 + $0x5c] sm:$0xf]
    %v130 = vld [vmem:[%s1 + $0x60] sm:$0xf]
    %v131 = vld [vmem:[%s1 + $0x64] sm:$0xf]
    %v132 = vld [vmem:[%s1 + $0x68] sm:$0xf]
    %v133 = vld [vmem:[%s1 + $0x6c] sm:$0xf]
    %v134 = vld [vmem:[%s1 + $0x70] sm:$0xf]
    %v135 = vld [vmem:[%s1 + $0x74] sm:$0xf]
    %v136 = vld [vmem:[%s1 + $0x78] sm:$0xf]
    %v137 = vld [vmem:[%s1 + $0x7c] sm:$0xf]
    %v138 = vld [vmem:[%s1 + $0x80] sm:$0xf]
    %v139 = vld [vmem:[%s1 + $0x84] sm:$0xf]
    %v140 = vld [vmem:[%s1 + $0x88] sm:$0xf]
    %v141 = vld [vmem:[%s1 + $0x8c] sm:$0xf]
    %v142 = vld [vmem:[%s1 + $0x90] sm:$0xf]
    %v143 = vld [vmem:[%s1 + $0x94] sm:$0xf]
    %v144 = vld [vmem:[%s1 + $0x98] sm:$0xf]
    %v145 = vld [vmem:[%s1 + $0x9c] sm:$0xf]
    %v146 = vld [vmem:[%s1 + $0xa0] sm:$0xf]
    %v147 = vld [vmem:[%s1 + $0xa4] sm:$0xf]
    %v148 = vld [vmem:[%s1 + $0xa8] sm:$0xf]
    %v149 = vld [vmem:[%s1 + $0xac] sm:$0xf]
    %v150 = vld [vmem:[%s1 + $0xb0] sm:$0xf]
    %v151 = vld [vmem:[%s1 + $0xb4] sm:$0xf]
    %v152 = vld [vmem:[%s1 + $0xb8] sm:$0xf]
    %v153 = vld [vmem:[%s1 + $0xbc] sm:$0xf]
    %v154 = vld [vmem:[%s1 + $0xc0] sm:$0xf]
    %v155 = vld [vmem:[%s1 + $0xc4] sm:$0xf]
    %v156 = vld [vmem:[%s1 + $0xc8] sm:$0xf]
    %v157 = vld [vmem:[%s1 + $0xcc] sm:$0xf]
    %v158 = vld [vmem:[%s1 + $0xd0] sm:$0xf]
    %v159 = vld [vmem:[%s1 + $0xd4] sm:$0xf]
    %v160 = vld [vmem:[%s1 + $0xd8] sm:$0xf]
    %v161 = vld [vmem:[%s1 + $0xdc] sm:$0xf]
    %v162 = vld [vmem:[%s1 + $0xe0] sm:$0xf]
    %v163 = vld [vmem:[%s1 + $0xe4] sm:$0xf]
    %v164 = vld [vmem:[%s1 + $0xe8] sm:$0xf]
    %v165 = vld [vmem:[%s1 + $0xec] sm:$0xf]
    %v166 = vld [vmem:[%s1 + $0xf0] sm:$0xf]
    %v167 = vld [vmem:[%s1 + $0xf4] sm:$0xf]
    %v168 = vld [vmem:[%s1 + $0xf8] sm:$0xf]
    %v169 = vld [vmem:[%s1 + $0xfc] sm:$0xf]
    %v170 = vld [vmem:[%s1 + $0x100] sm:$0xf]
    %v171 = vld [vmem:[%s1 + $0x104] sm:$0xf]
    %v172 = vld [vmem:[%s1 + $0x108] sm:$0xf]
    %v173 = vld [vmem:[%s1 + $0x10c] sm:$0xf]
    %v174 = vld [vmem:[%s1 + $0x110] sm:$0xf]
    %v175 = vld [vmem:[%s1 + $0x114] sm:$0xf]
    %v176 = vld [vmem:[%s1 + $0x118] sm:$0xf]
    %v177 = vld [vmem:[%s1 + $0x11c] sm:$0xf]
    %v178 = vld [vmem:[%s1 + $0x120] sm:$0xf]
    %v179 = vld [vmem:[%s1 + $0x124] sm:$0xf]
    %v180 = vld [vmem:[%s1 + $0x128] sm:$0xf]
    %v181 = vld [vmem:[%s1 + $0x12c] sm:$0xf]
    %v182 = vld [vmem:[%s1 + $0x130] sm:$0xf]
    %v183 = vld [vmem:[%s1 + $0x134] sm:$0xf]
    %v184 = vld [vmem:[%s1 + $0x138] sm:$0xf]
    %v185 = vld [vmem:[%s1 + $0x13c] sm:$0xf]
    %v186 = vld [vmem:[%s1 + $0x140] sm:$0xf]
    %v187 = vld [vmem:[%s1 + $0x144] sm:$0xf]
    %v188 = vld [vmem:[%s1 + $0x148] sm:$0xf]
    %v189 = vld [vmem:[%s1 + $0x14c] sm:$0xf]
    %v190 = vld [vmem:[%s1 + $0x150] sm:$0xf]
    %v191 = vld [vmem:[%s1 + $0x154] sm:$0xf]
    %v192 = vld [vmem:[%s1 + $0x158] sm:$0xf]
    %v193 = vld [vmem:[%s1 + $0x15c] sm:$0xf]
    %v194 = vld [vmem:[%s1 + $0x160] sm:$0xf]
    %v195 = vld [vmem:[%s1 + $0x164] sm:$0xf]
    %v196 = vld [vmem:[%s2] sm:$0x1]
    %v198 = vperm.slane %v196, 0
    %v290 = vunpack.c.l.b16 %v106
    %v291 = vunpack.c.l.b16 %v107
    %v292 = vunpack.c.l.b16 %v108
    %v293 = vunpack.c.l.b16 %v109
    %v294 = vunpack.c.l.b16 %v110
    %v295 = vunpack.c.l.b16 %v111
    %v296 = vunpack.c.l.b16 %v112
    %v297 = vunpack.c.l.b16 %v113
    %v298 = vunpack.c.l.b16 %v114
    %v299 = vunpack.c.l.b16 %v115
    %v300 = vunpack.c.l.b16 %v116
    %v301 = vunpack.c.l.b16 %v117
    %v302 = vunpack.c.l.b16 %v118
    %v303 = vunpack.c.l.b16 %v119
    %v304 = vunpack.c.l.b16 %v120
    %v305 = vunpack.c.l.b16 %v121
    %v306 = vunpack.c.l.b16 %v122
    %v307 = vunpack.c.l.b16 %v123
    %v308 = vunpack.c.l.b16 %v124
    %v309 = vunpack.c.l.b16 %v125
    %v310 = vunpack.c.l.b16 %v126
    %v311 = vunpack.c.l.b16 %v127
    %v312 = vunpack.c.l.b16 %v128
    %v313 = vunpack.c.l.b16 %v129
    %v314 = vunpack.c.l.b16 %v130
    %v315 = vunpack.c.l.b16 %v131
    %v316 = vunpack.c.l.b16 %v132
    %v317 = vunpack.c.l.b16 %v133
    %v318 = vunpack.c.l.b16 %v134
    %v319 = vunpack.c.l.b16 %v135
    %v320 = vunpack.c.l.b16 %v136
    %v321 = vunpack.c.l.b16 %v137
    %v322 = vunpack.c.l.b16 %v138
    %v323 = vunpack.c.l.b16 %v139
    %v324 = vunpack.c.l.b16 %v140
    %v325 = vunpack.c.l.b16 %v141
    %v326 = vunpack.c.l.b16 %v142
    %v327 = vunpack.c.l.b16 %v143
    %v328 = vunpack.c.l.b16 %v144
    %v329 = vunpack.c.l.b16 %v145
    %v330 = vunpack.c.l.b16 %v146
    %v331 = vunpack.c.l.b16 %v147
    %v332 = vunpack.c.l.b16 %v148
    %v333 = vunpack.c.l.b16 %v149
    %v334 = vunpack.c.l.b16 %v150
    %v335 = vunpack.c.l.b16 %v151
    %v336 = vunpack.c.l.b16 %v152
    %v337 = vunpack.c.l.b16 %v153
    %v338 = vunpack.c.l.b16 %v154
    %v339 = vunpack.c.l.b16 %v155
    %v340 = vunpack.c.l.b16 %v156
    %v341 = vunpack.c.l.b16 %v157
    %v342 = vunpack.c.l.b16 %v158
    %v343 = vunpack.c.l.b16 %v159
    %v344 = vunpack.c.l.b16 %v160
    %v345 = vunpack.c.l.b16 %v161
    %v346 = vunpack.c.l.b16 %v162
    %v347 = vunpack.c.l.b16 %v163
    %v348 = vunpack.c.l.b16 %v164
    %v349 = vunpack.c.l.b16 %v165
    %v350 = vunpack.c.l.b16 %v166
    %v351 = vunpack.c.l.b16 %v167
    %v352 = vunpack.c.l.b16 %v168
    %v353 = vunpack.c.l.b16 %v169
    %v354 = vunpack.c.l.b16 %v170
    %v355 = vunpack.c.l.b16 %v171
    %v356 = vunpack.c.l.b16 %v172
    %v357 = vunpack.c.l.b16 %v173
    %v358 = vunpack.c.l.b16 %v174
    %v359 = vunpack.c.l.b16 %v175
    %v360 = vunpack.c.l.b16 %v176
    %v361 = vunpack.c.l.b16 %v177
    %v362 = vunpack.c.l.b16 %v178
    %v363 = vunpack.c.l.b16 %v179
    %v364 = vunpack.c.l.b16 %v180
    %v365 = vunpack.c.l.b16 %v181
    %v366 = vunpack.c.l.b16 %v182
    %v367 = vunpack.c.l.b16 %v183
    %v368 = vunpack.c.l.b16 %v184
    %v369 = vunpack.c.l.b16 %v185
    %v370 = vunpack.c.l.b16 %v186
    %v371 = vunpack.c.l.b16 %v187
    %v372 = vunpack.c.l.b16 %v188
    %v373 = vunpack.c.l.b16 %v189
    %v374 = vunpack.c.l.b16 %v190
    %v375 = vunpack.c.l.b16 %v191
    %v376 = vunpack.c.l.b16 %v192
    %v377 = vunpack.c.l.b16 %v193
    %v378 = vunpack.c.l.b16 %v194
    %v379 = vunpack.c.l.b16 %v195
    %v380 = vpack.c.b16 %v291, %v290
    %v381 = vpack.c.b16 %v293, %v292
    %v382 = vpack.c.b16 %v295, %v294
    %v383 = vpack.c.b16 %v297, %v296
    %v384 = vpack.c.b16 %v299, %v298
    %v385 = vpack.c.b16 %v301, %v300
    %v386 = vpack.c.b16 %v303, %v302
    %v387 = vpack.c.b16 %v305, %v304
    %v388 = vpack.c.b16 %v307, %v306
    %v389 = vpack.c.b16 %v309, %v308
    %v390 = vpack.c.b16 %v311, %v310
    %v391 = vpack.c.b16 %v313, %v312
    %v392 = vpack.c.b16 %v315, %v314
    %v393 = vpack.c.b16 %v317, %v316
    %v394 = vpack.c.b16 %v319, %v318
    %v395 = vpack.c.b16 %v321, %v320
    %v396 = vpack.c.b16 %v323, %v322
    %v397 = vpack.c.b16 %v325, %v324
    %v398 = vpack.c.b16 %v327, %v326
    %v399 = vpack.c.b16 %v329, %v328
    %v400 = vpack.c.b16 %v331, %v330
    %v401 = vpack.c.b16 %v333, %v332
    %v402 = vpack.c.b16 %v335, %v334
    %v403 = vpack.c.b16 %v337, %v336
    %v404 = vpack.c.b16 %v339, %v338
    %v405 = vpack.c.b16 %v341, %v340
    %v406 = vpack.c.b16 %v343, %v342
    %v407 = vpack.c.b16 %v345, %v344
    %v408 = vpack.c.b16 %v347, %v346
    %v409 = vpack.c.b16 %v349, %v348
    %v410 = vpack.c.b16 %v351, %v350
    %v411 = vpack.c.b16 %v353, %v352
    %v412 = vpack.c.b16 %v355, %v354
    %v413 = vpack.c.b16 %v357, %v356
    %v414 = vpack.c.b16 %v359, %v358
    %v415 = vpack.c.b16 %v361, %v360
    %v416 = vpack.c.b16 %v363, %v362
    %v417 = vpack.c.b16 %v365, %v364
    %v418 = vpack.c.b16 %v367, %v366
    %v419 = vpack.c.b16 %v369, %v368
    %v420 = vpack.c.b16 %v371, %v370
    %v421 = vpack.c.b16 %v373, %v372
    %v422 = vpack.c.b16 %v375, %v374
    %v423 = vpack.c.b16 %v377, %v376
    %v424 = vpack.c.b16 %v379, %v378
    %vm470 = vcmask 654336
    %v472 = vsel %vm470, %v105, 0
    %474 = vmatpush.bf16.msra.mxu0 %v387
    %475 = vmatpush.bf16.msra.mxu0 %v386
    %476 = vmatpush.bf16.msra.mxu0 %v385
    %477 = vmatpush.bf16.msra.mxu0 %v384
    %478 = vmatpush.bf16.msra.mxu0 %v383
    %479 = vmatpush.bf16.msra.mxu0 %v382
    %480 = vmatpush.bf16.msra.mxu0 %v381
    %481 = vmatpush.bf16.msra.mxu0 %v380
    %482 = vmatmul.bf16.gmra.mxu0 %v100
    %v483 = vpop.f32.mrf.mxu0
    %v484 = vadd.f32 %v198, %v483
    %v485 = vpop.f32.mrf.mxu0
    %v486 = vadd.f32 %v198, %v485
    %487 = vdwg.mxu0
    %488 = vmatpush.bf16.msra.mxu0 %v395
    %489 = vmatpush.bf16.msra.mxu0 %v394
    %490 = vmatpush.bf16.msra.mxu0 %v393
    %491 = vmatpush.bf16.msra.mxu0 %v392
    %492 = vmatpush.bf16.msra.mxu0 %v391
    %493 = vmatpush.bf16.msra.mxu0 %v390
    %494 = vmatpush.bf16.msra.mxu0 %v389
    %495 = vmatpush.bf16.msra.mxu0 %v388
    %496 = vmatmul.bf16.gmra.mxu0 %v101
    %v497 = vpop.f32.mrf.mxu0
    %v498 = vadd.f32 %v484, %v497
    %v499 = vpop.f32.mrf.mxu0
    %v500 = vadd.f32 %v486, %v499
    %501 = vdwg.mxu0
    %502 = vmatpush.bf16.msra.mxu0 %v403
    %503 = vmatpush.bf16.msra.mxu0 %v402
    %504 = vmatpush.bf16.msra.mxu0 %v401
    %505 = vmatpush.bf16.msra.mxu0 %v400
    %506 = vmatpush.bf16.msra.mxu0 %v399
    %507 = vmatpush.bf16.msra.mxu0 %v398
    %508 = vmatpush.bf16.msra.mxu0 %v397
    %509 = vmatpush.bf16.msra.mxu0 %v396
    %510 = vmatmul.bf16.gmra.mxu0 %v102
    %v511 = vpop.f32.mrf.mxu0
    %v512 = vadd.f32 %v498, %v511
    %v513 = vpop.f32.mrf.mxu0
    %v514 = vadd.f32 %v500, %v513
    %515 = vdwg.mxu0
    %516 = vmatpush.bf16.msra.mxu0 %v411
    %517 = vmatpush.bf16.msra.mxu0 %v410
    %518 = vmatpush.bf16.msra.mxu0 %v409
    %519 = vmatpush.bf16.msra.mxu0 %v408
    %520 = vmatpush.bf16.msra.mxu0 %v407
    %521 = vmatpush.bf16.msra.mxu0 %v406
    %522 = vmatpush.bf16.msra.mxu0 %v405
    %523 = vmatpush.bf16.msra.mxu0 %v404
    %524 = vmatmul.bf16.gmra.mxu0 %v103
    %v525 = vpop.f32.mrf.mxu0
    %v526 = vadd.f32 %v512, %v525
    %v527 = vpop.f32.mrf.mxu0
    %v528 = vadd.f32 %v514, %v527
    %529 = vdwg.mxu0
    %530 = vmatpush.bf16.msra.mxu0 %v419
    %531 = vmatpush.bf16.msra.mxu0 %v418
    %532 = vmatpush.bf16.msra.mxu0 %v417
    %533 = vmatpush.bf16.msra.mxu0 %v416
    %534 = vmatpush.bf16.msra.mxu0 %v415
    %535 = vmatpush.bf16.msra.mxu0 %v414
    %536 = vmatpush.bf16.msra.mxu0 %v413
    %537 = vmatpush.bf16.msra.mxu0 %v412
    %538 = vmatmul.bf16.gmra.mxu0 %v104
    %v539 = vpop.f32.mrf.mxu0
    %v540 = vadd.f32 %v526, %v539
    %v541 = vpop.f32.mrf.mxu0
    %v542 = vadd.f32 %v528, %v541
    %543 = vdwg.mxu0
    %544 = vmatpush.bf16.msra.mxu0 0
    %545 = vmatpush.bf16.msra.mxu0 0
    %546 = vmatpush.bf16.msra.mxu0 0
    %547 = vmatpush.bf16.msra.mxu0 %v424
    %548 = vmatpush.bf16.msra.mxu0 %v423
    %549 = vmatpush.bf16.msra.mxu0 %v422
    %550 = vmatpush.bf16.msra.mxu0 %v421
    %551 = vmatpush.bf16.msra.mxu0 %v420
    %552 = vmatmul.bf16.gmra.mxu0 %v472
    %v553 = vpop.f32.mrf.mxu0
    %v554 = vadd.f32 %v540, %v553
    %v555 = vpop.f32.mrf.mxu0
    %v556 = vadd.f32 %v542, %v555
    %557 = vdwg.mxu0
    %v558 = vmax.f32 %v554, 0.0
    %v559 = vmax.f32 %v556, 0.0
    %v560 = vpack.c.bf16 %v559, %v558
    %v561 = vld [vmem:[%s3] sm:$0xf]
    %v562 = vld [vmem:[%s3 + $0x4] sm:$0xf]
    %v563 = vld [vmem:[%s3 + $0x8] sm:$0xf]
    %v564 = vld [vmem:[%s3 + $0xc] sm:$0xf]
    %v565 = vld [vmem:[%s3 + $0x10] sm:$0xf]
    %v566 = vld [vmem:[%s3 + $0x14] sm:$0xf]
    %v567 = vld [vmem:[%s3 + $0x18] sm:$0xf]
    %v568 = vld [vmem:[%s3 + $0x1c] sm:$0xf]
    %v569 = vld [vmem:[%s3 + $0x20] sm:$0xf]
    %v570 = vld [vmem:[%s3 + $0x24] sm:$0xf]
    %v571 = vld [vmem:[%s3 + $0x28] sm:$0xf]
    %v572 = vld [vmem:[%s3 + $0x2c] sm:$0xf]
    %v573 = vld [vmem:[%s3 + $0x30] sm:$0xf]
    %v574 = vld [vmem:[%s3 + $0x34] sm:$0xf]
    %v575 = vld [vmem:[%s3 + $0x38] sm:$0xf]
    %v576 = vld [vmem:[%s3 + $0x3c] sm:$0xf]
    %v577 = vld [vmem:[%s4] sm:$0x1]
    %v579 = vperm.slane %v577, 0
    %v597 = vunpack.c.l.b16 %v561
    %v598 = vunpack.c.l.b16 %v562
    %v599 = vunpack.c.l.b16 %v563
    %v600 = vunpack.c.l.b16 %v564
    %v601 = vunpack.c.l.b16 %v565
    %v602 = vunpack.c.l.b16 %v566
    %v603 = vunpack.c.l.b16 %v567
    %v604 = vunpack.c.l.b16 %v568
    %v605 = vunpack.c.l.b16 %v569
    %v606 = vunpack.c.l.b16 %v570
    %v607 = vunpack.c.l.b16 %v571
    %v608 = vunpack.c.l.b16 %v572
    %v609 = vunpack.c.l.b16 %v573
    %v610 = vunpack.c.l.b16 %v574
    %v611 = vunpack.c.l.b16 %v575
    %v612 = vunpack.c.l.b16 %v576
    %v613 = vpack.c.b16 %v598, %v597
    %v614 = vpack.c.b16 %v600, %v599
    %v615 = vpack.c.b16 %v602, %v601
    %v616 = vpack.c.b16 %v604, %v603
    %v617 = vpack.c.b16 %v606, %v605
    %v618 = vpack.c.b16 %v608, %v607
    %v619 = vpack.c.b16 %v610, %v609
    %v620 = vpack.c.b16 %v612, %v611
    %629 = vmatpush.bf16.msra.mxu0 %v620
    %630 = vmatpush.bf16.msra.mxu0 %v619
    %631 = vmatpush.bf16.msra.mxu0 %v618
    %632 = vmatpush.bf16.msra.mxu0 %v617
    %633 = vmatpush.bf16.msra.mxu0 %v616
    %634 = vmatpush.bf16.msra.mxu0 %v615
    %635 = vmatpush.bf16.msra.mxu0 %v614
    %636 = vmatpush.bf16.msra.mxu0 %v613
    %637 = vmatmul.bf16.gmra.mxu0 %v560
    %v638 = vpop.f32.mrf.mxu0
    %v639 = vadd.f32 %v579, %v638
    %v640 = vpop.f32.mrf.mxu0
    %v641 = vadd.f32 %v579, %v640
    %642 = vdwg.mxu0
    %v643 = vpack.c.bf16 %v639, %v639
    %v644 = vpack.c.bf16 %v641, %v641
    %v647 = vrot.slane %v643, 3
    %v648 = vrot.slane %v644, 3
    %vm649 = vcmask 1040384
    %v652 = vsel %vm649, %v643, %v647
    %vm653 = vcmask 1041409
    %v654 = vsel %vm653, %v643, %v647
    %v656 = vrot.slane %v654, 1
    %vm657 = vcmask 1042434
    %v658 = vsel %vm657, %v643, %v647
    %v660 = vrot.slane %v658, 2
    %vm661 = vcmask 1043459
    %v662 = vsel %vm661, %v643, %v647
    %v664 = vrot.slane %v662, 3
    %v667 = vsel %vm649, %v644, %v648
    %v668 = vsel %vm653, %v644, %v648
    %v670 = vrot.slane %v668, 1
    %v671 = vsel %vm657, %v644, %v648
    %v673 = vrot.slane %v671, 2
    %v674 = vsel %vm661, %v644, %v648
    %v676 = vrot.slane %v674, 3
    %685 = vst [vmem:[#allocation2] sm:$0x1] %v652
    %686 = vst [vmem:[#allocation2 + $0x1] sm:$0x1] %v656
    %687 = vst [vmem:[#allocation2 + $0x2] sm:$0x1] %v660
    %688 = vst [vmem:[#allocation2 + $0x3] sm:$0x1] %v664
    %689 = vst [vmem:[#allocation2 + $0x4] sm:$0x1] %v667
    %690 = vst [vmem:[#allocation2 + $0x5] sm:$0x1] %v670
    %691 = vst [vmem:[#allocation2 + $0x6] sm:$0x1] %v673
    %692 = vst [vmem:[#allocation2 + $0x7] sm:$0x1] %v676
    // Predicated region
    $region22: #{dqn_forward.1} parent=1 // pred_check
      _
    $region23: #{dqn_forward.1} parent=1 // pred_check_branch
      %694 = sbr.rel (0) target = $region25
    $region24: #{dqn_forward.1} parent=1 // pred_region
      // Predicated region
      $region26: #{dqn_forward.1} parent=24 // pred_check
        _
      $region27: #{dqn_forward.1} parent=24 // pred_check_branch
        %696 = sbr.rel (0) target = $region29
      $region28: #{dqn_forward.1} parent=24 // pred_region
        // Predicated region
        $region30: #{dqn_forward.1} parent=28 // pred_check
          _
        $region31: #{dqn_forward.1} parent=28 // pred_check_branch
          %698 = sbr.rel target = $region33
        $region32: #{dqn_forward.1} parent=28 // pred_region
          // Predicated region
          $region45: #{dqn_forward.1} parent=32 // pred_check
            _
          $region46: #{dqn_forward.1} parent=32 // pred_check_branch
            %714 = sbr.rel (0) target = $region48
          $region47: #{dqn_forward.1} parent=32 // pred_region
            %s716 = ssub.s32 2, 1
            loop: start=0, step=1, limit=1
            $region49: #{dqn_forward.1} parent=47 // loop_pre_header
              _
            $region50: #{dqn_forward.1} parent=47 // loop_header
              %s718 = sphi 0, %s722
              %p719 = scmp.ge.s32.totalorder %s718, 1
              %s723 = sphi [#allocation2], [#allocation2]
              %s724 = sphi %s5, %s5
            $region51: #{dqn_forward.1} parent=47 // loop_header_branch
              %721 = sbr.rel (%p719) target = $region55
            $region52: #{dqn_forward.1} parent=47 // loop_body
              %v725 = vld [vmem:[%s723] sm:%s716]
              %726 = vst [vmem:[%s724] sm:%s716] %v725
            $region53: #{dqn_forward.1} parent=47 // loop_footer
              %s722 = sadd.s32 1, %s718
            $region54: #{dqn_forward.1} parent=47 // loop_footer_branch
              %717 = sbr.rel target = $region50
            $region55: #{dqn_forward.1} parent=47 // loop_exit
              _
          $region48: #{dqn_forward.1} parent=32 // pred_fallthru
            _
        $region33: #{dqn_forward.1} parent=28 // pred_fallthru
          _
        // Predicated region
        $region34: #{dqn_forward.1} parent=28 // pred_check
          _
        $region35: #{dqn_forward.1} parent=28 // pred_check_branch
          %700 = sbr.rel (0) target = $region37
        $region36: #{dqn_forward.1} parent=28 // pred_region
          %s702 = ssub.s32 2, 1
          loop: start=0, step=1, limit=1
          $region38: #{dqn_forward.1} parent=36 // loop_pre_header
            _
          $region39: #{dqn_forward.1} parent=36 // loop_header
            %s704 = sphi 0, %s708
            %p705 = scmp.ge.s32.totalorder %s704, 1
            %s709 = sphi [#allocation2], [#allocation2]
            %s710 = sphi %s5, %s5
          $region40: #{dqn_forward.1} parent=36 // loop_header_branch
            %707 = sbr.rel (%p705) target = $region44
          $region41: #{dqn_forward.1} parent=36 // loop_body
            %v711 = vld [vmem:[%s709] sm:%s702]
            %712 = vst [vmem:[%s710] sm:%s702] %v711
          $region42: #{dqn_forward.1} parent=36 // loop_footer
            %s708 = sadd.s32 1, %s704
          $region43: #{dqn_forward.1} parent=36 // loop_footer_branch
            %703 = sbr.rel target = $region39
          $region44: #{dqn_forward.1} parent=36 // loop_exit
            _
        $region37: #{dqn_forward.1} parent=28 // pred_fallthru
          _
      $region29: #{dqn_forward.1} parent=24 // pred_fallthru
        _
      %727 = vnop
    $region25: #{dqn_forward.1} parent=1 // pred_fallthru
      _
    // Predicated region
    $region56: #{dqn_forward.1} parent=1 // pred_check
      _
    $region57: #{dqn_forward.1} parent=1 // pred_check_branch
      %729 = sbr.rel (0) target = $region59
    $region58: #{dqn_forward.1} parent=1 // pred_region
      _
    $region59: #{dqn_forward.1} parent=1 // pred_fallthru
      _

</llo_original>
